<compile_context>
chip_gen: v7x
topology: tpu7x:2x2x1
jax: 0.10.0
libtpu: 0.0.40
codegen_flags: <defaults>
</compile_context>

<pallas_src>
import functools

import jax
import jax.numpy as jnp
from jax import lax
from jax.experimental import pallas as pl
from jax.experimental.pallas import tpu as pltpu


def _round_up(x, m):
    return (x + m - 1) // m * m


def _tpu_defaults():
    """(block_rows, vmem_limit cap) tuned to the generation's physical VMEM."""
    vmem_bytes = 64 << 20                       # assume the smallest (v7x) if query fails
    try:
        info = pltpu.get_tpu_info()
        vmem_bytes = int(getattr(info, "vmem_capacity_bytes", vmem_bytes))
    except Exception:
        pass
    if vmem_bytes >= (100 << 20):               # v5e / v6e: 128 MiB physical VMEM
        return 512, 96 << 20
    return 256, 48 << 20                        # v7x: 64 MiB physical -> keep headroom


# --------------------------------------------------------------------------------------
# rbf path
# --------------------------------------------------------------------------------------

def _rbf_pair_sum_kernel(i_tbl_ref, j_tbl_ref, a_ref, b_ref, asq_ref, bsq_ref,
                         coefs_ref, out_ref, *, kernel_num, use_squaring, symmetric):
    """One (tm, tn) tile of sum_{i,j} sum_k exp(coef_k * ||a_i - b_j||^2)."""
    s = pl.program_id(0)

    # Gram matrix: contract the feature axis of BOTH operands (no .T / XLU transpose,
    # no extra VMEM copy); f32 accumulation on the MXU, bf16 inputs feed it natively.
    gram = lax.dot_general(a_ref[...], b_ref[...], (((1,), (1,)), ((), ())),
                           preferred_element_type=jnp.float32)          # (tm, tn)

    # ||a_i - b_j||^2 via the matmul identity.  Row norms are precomputed in the wrapper
    # ((tm,1) + (1,tn) broadcast -> no in-kernel reductions); padded rows/cols carry +inf
    # norms so their kernel values underflow to exp(-inf) = 0 -- no masking needed.
    l2 = jnp.maximum(asq_ref[...] + bsq_ref[...] - 2.0 * gram, 0.0)

    if use_squaring:
        # kernel_mul == 2: geometric bandwidth ladder.  One EUP exp (widest bandwidth),
        # the remaining bandwidths by repeated squaring on the VPU.  The kernel is
        # EUP-bound, so this cuts the saturating slot's work ~kernel_num x.
        t = jnp.exp(l2 * coefs_ref[kernel_num - 1])
        acc = t
        for _ in range(kernel_num - 1):
            t = t * t
            acc = acc + t
    else:
        # Generic bandwidth list: one exp per bandwidth (divides hoisted into scalar
        # coefficients in the wrapper).
        acc = jnp.exp(l2 * coefs_ref[0])
        for k in range(1, kernel_num):
            acc = acc + jnp.exp(l2 * coefs_ref[k])

    partial = jnp.sum(acc)
    if symmetric:
        # Only the upper triangle of tiles is visited; off-diagonal tiles count twice.
        partial = partial * jnp.where(i_tbl_ref[s] == j_tbl_ref[s], 1.0, 2.0)

    # Lane-dense (8, 128) output block owned by this grid step (no revisited accumulator
    # -> the grid axis stays "parallel" for v7x 2-TC sharding).  Only [0, 0] carries the
    # partial; the wrapper sums the tiny result array.
    row0 = lax.broadcasted_iota(jnp.int32, (8, 128), 0) == 0
    col0 = lax.broadcasted_iota(jnp.int32, (8, 128), 1) == 0
    out_ref[...] = jnp.where(row0 & col0, partial, 0.0)


def _rbf_pair_sum(a, b, a_sq, b_sq, coefs, *, kernel_num, use_squaring, symmetric,
                  block_rows, vmem_cap):
    """sum_{i,j} sum_k exp(coef_k * ||a_i - b_j||^2), tiled over both operands."""
    m, d = a.shape
    p = b.shape[0]

    # Zero-pad the feature dim to a multiple of 128: changes neither the Gram nor the
    # (precomputed) norms, and gives clean MXU passes / unmasked lane DMA (v5e 128-MXU).
    d_pad = _round_up(d, 128)
    if d_pad != d:
        a = jnp.pad(a, ((0, 0), (0, d_pad - d)))
        b = a if symmetric else jnp.pad(b, ((0, 0), (0, d_pad - d)))

    tm = min(block_rows, _round_up(m, 8))
    tn = min(block_rows, _round_up(p, 8))
    m_pad = _round_up(m, tm)
    p_pad = _round_up(p, tn)
    a_pad = a if m_pad == m else jnp.pad(a, ((0, m_pad - m), (0, 0)))
    if symmetric:
        b_pad = a_pad
    else:
        b_pad = b if p_pad == p else jnp.pad(b, ((0, p_pad - p), (0, 0)))
    gm, gn = m_pad // tm, p_pad // tn

    # Precomputed row norms; padded rows get +inf so their kernel entries become 0.
    a_sq_col = jnp.pad(a_sq.astype(jnp.float32), (0, m_pad - m),
                       constant_values=float("inf")).reshape(m_pad, 1)
    b_sq_row = jnp.pad(b_sq.astype(jnp.float32), (0, p_pad - p),
                       constant_values=float("inf")).reshape(1, p_pad)

    # Tile-index tables (scalar-prefetched into SMEM).  Symmetric quadrants only visit
    # the upper triangle of tiles; the rectangular xy quadrant visits every tile pair.
    if symmetric:
        pairs = [(i, j) for i in range(gm) for j in range(i, gn)]
    else:
        pairs = [(i, j) for i in range(gm) for j in range(gn)]
    i_tbl = jnp.asarray([ij[0] for ij in pairs], dtype=jnp.int32)
    j_tbl = jnp.asarray([ij[1] for ij in pairs], dtype=jnp.int32)
    nsteps = len(pairs)

    itemsize = jnp.dtype(a_pad.dtype).itemsize
    vmem_est = (2 * 2 * (tm + tn) * d_pad * itemsize   # double-buffered data tiles
                + 2 * 2 * (tm + tn) * 4                # double-buffered norm tiles
                + 8 * tm * tn * 4                      # gram/l2/t/acc f32 temporaries (+margin)
                + 2 * 8 * 128 * 4                      # double-buffered output block
                + (2 << 20))                           # compiler-internal scratch headroom
    vmem_limit = int(min(max(vmem_est, 16 << 20), vmem_cap))

    kernel = functools.partial(_rbf_pair_sum_kernel, kernel_num=kernel_num,
                               use_squaring=use_squaring, symmetric=symmetric)

    partials = pl.pallas_call(
        kernel,
        out_shape=jax.ShapeDtypeStruct((nsteps * 8, 128), jnp.float32),
        grid_spec=pltpu.PrefetchScalarGridSpec(
            num_scalar_prefetch=2,
            grid=(nsteps,),
            in_specs=[
                pl.BlockSpec((tm, d_pad), lambda s, it, jt: (it[s], 0)),
                pl.BlockSpec((tn, d_pad), lambda s, it, jt: (jt[s], 0)),
                pl.BlockSpec((tm, 1), lambda s, it, jt: (it[s], 0)),
                pl.BlockSpec((1, tn), lambda s, it, jt: (0, jt[s])),
                pl.BlockSpec(memory_space=pltpu.MemorySpace.SMEM),      # coefs (scalars)
            ],
            out_specs=pl.BlockSpec((8, 128), lambda s, it, jt: (s, 0)),
        ),
        compiler_params=pltpu.CompilerParams(
            dimension_semantics=("parallel",),
            vmem_limit_bytes=vmem_limit),
    )(i_tbl, j_tbl, a_pad, b_pad, a_sq_col, b_sq_row, coefs)
    return jnp.sum(partials)


# --------------------------------------------------------------------------------------
# linear path (tiled so it is VMEM-safe for any N, incl. v7x's 64 MiB)
# --------------------------------------------------------------------------------------

def _col_sum_kernel(x_ref, out_ref):
    @pl.when(pl.program_id(0) == 0)
    def _():
        out_ref[...] = jnp.zeros_like(out_ref)
    s = jnp.sum(x_ref[...].astype(jnp.float32), axis=0, keepdims=True)   # (1, D)
    out_ref[...] += jnp.broadcast_to(s, out_ref.shape)


def _column_sums(x, *, block_rows):
    m, d = x.shape
    tm = min(block_rows, _round_up(m, 8))
    m_pad = _round_up(m, tm)
    xp = x if m_pad == m else jnp.pad(x, ((0, m_pad - m), (0, 0)))   # zero rows add nothing
    return pl.pallas_call(
        _col_sum_kernel,
        out_shape=jax.ShapeDtypeStruct((8, d), jnp.float32),
        grid=(m_pad // tm,),
        in_specs=[pl.BlockSpec((tm, d), lambda i: (i, 0))],
        out_specs=pl.BlockSpec((8, d), lambda i: (0, 0)),
        compiler_params=pltpu.CompilerParams(
            dimension_semantics=("arbitrary",)),
    )(xp)


def _linear_finish_kernel(counts_ref, sx_ref, sy_ref, out_ref):
    delta = (sx_ref[0:1, :] * (1.0 / counts_ref[0])
             - sy_ref[0:1, :] * (1.0 / counts_ref[1]))
    out_ref[0, 0] = jnp.sum(delta * delta)


def _linear_mmd(x, y, *, block_rows):
    """linear_mmd: delta = mean(X,0) - mean(Y,0); loss = delta . delta"""
    sx = _column_sums(x, block_rows=block_rows)
    sy = _column_sums(y, block_rows=block_rows)
    counts = jnp.asarray([x.shape[0], y.shape[0]], dtype=jnp.float32)
    out = pl.pallas_call(
        _linear_finish_kernel,
        out_shape=jax.ShapeDtypeStruct((1, 1), jnp.float32),
        in_specs=[pl.BlockSpec(memory_space=pltpu.MemorySpace.SMEM),
                  pl.BlockSpec(memory_space=pltpu.MemorySpace.VMEM),
                  pl.BlockSpec(memory_space=pltpu.MemorySpace.VMEM)],
        out_specs=pl.BlockSpec(memory_space=pltpu.MemorySpace.SMEM),
    )(counts, sx, sy)
    return out[0, 0]


# --------------------------------------------------------------------------------------
# public wrapper (matches MMD_loss.forward)
# --------------------------------------------------------------------------------------

def mmd_loss(source, target, kernel_type="rbf", kernel_mul=2.0, kernel_num=5,
             fix_sigma=None, block_rows=None):
    assert source.ndim == 2 and target.ndim == 2
    assert source.shape[1] == target.shape[1]

    auto_rows, vmem_cap = _tpu_defaults()
    rows = auto_rows if block_rows is None else max(128, _round_up(int(block_rows), 128))

    if kernel_type == "linear":
        return _linear_mmd(source, target, block_rows=rows)

    # rbf (default).  No wrapper-side concatenate: the kernel-matrix quadrants are
    # computed straight from source/target (sum K_yx == sum K_xy by symmetry).
    b = source.shape[0]
    bt = target.shape[0]
    n = b + bt

    s32 = source.astype(jnp.float32)
    t32 = target.astype(jnp.float32)
    # Per-row squared norms: reused both for the bandwidth statistics (O(N*D), no N x N
    # matrix ever materialized) and as side inputs to the tile kernel.
    sq_s = jnp.sum(s32 * s32, axis=1)
    sq_t = jnp.sum(t32 * t32, axis=1)

    if fix_sigma:
        bandwidth = jnp.float32(fix_sigma)
    else:
        # sum_{i,j} ||t_i - t_j||^2 = 2*N*sum_i ||t_i||^2 - 2*||sum_i t_i||^2
        sum_sq = jnp.sum(sq_s) + jnp.sum(sq_t)
        col_sum = jnp.sum(s32, axis=0) + jnp.sum(t32, axis=0)
        l2_sum = 2.0 * n * sum_sq - 2.0 * jnp.dot(col_sum, col_sum)
        # NaN/inf when source == target (division by ~0), matching the PyTorch module.
        bandwidth = l2_sum / float(n * n - n)
    bandwidth = bandwidth / (kernel_mul ** (kernel_num // 2))
    # Hoist the per-bandwidth divides: exp(-l2 / (bw * mul^k)) == exp(coef_k * l2).
    mults = jnp.asarray([kernel_mul ** i for i in range(kernel_num)], jnp.float32)
    coefs = (-1.0 / (bandwidth * mults)).astype(jnp.float32)

    use_squaring = float(kernel_mul) == 2.0      # geometric ladder is exact only for mul=2

    common = dict(kernel_num=kernel_num, use_squaring=use_squaring,
                  block_rows=rows, vmem_cap=vmem_cap)
    sum_xx = _rbf_pair_sum(source, source, sq_s, sq_s, coefs, symmetric=True, **common)
    sum_yy = _rbf_pair_sum(target, target, sq_t, sq_t, coefs, symmetric=True, **common)
    sum_xy = _rbf_pair_sum(source, target, sq_s, sq_t, coefs, symmetric=False, **common)

    return (sum_xx / float(b * b) + sum_yy / float(bt * bt)
            - 2.0 * sum_xy / float(b * bt))


# --------------------------------------------------------------------------------------
# pure-JAX reference mirroring the PyTorch module (rbf path)
# --------------------------------------------------------------------------------------

def _mmd_loss_ref(source, target, kernel_mul=2.0, kernel_num=5):
    b = source.shape[0]
    total = jnp.concatenate([source, target], axis=0).astype(jnp.float32)
    n = total.shape[0]
    diff = total[None, :, :] - total[:, None, :]
    l2 = jnp.sum(diff * diff, axis=2)
    bandwidth = jnp.sum(l2) / (n * n - n)
    bandwidth = bandwidth / (kernel_mul ** (kernel_num // 2))
    kernels = sum(jnp.exp(-l2 / (bandwidth * kernel_mul ** i))
                  for i in range(kernel_num))
    xx = jnp.mean(kernels[:b, :b])
    yy = jnp.mean(kernels[b:, b:])
    xy = jnp.mean(kernels[:b, b:])
    yx = jnp.mean(kernels[b:, :b])
    return xx + yy - xy - yx


if __name__ == "__main__":
    key = jax.random.PRNGKey(0)
    k1, k2, k3, k4 = jax.random.split(key, 4)

    # Small default shapes consistent with the module's 2-D (batch, features) inputs.
    B, D = 8, 32
    source = jax.random.normal(k1, (B, D), dtype=jnp.float32)
    target = jax.random.normal(k2, (B, D), dtype=jnp.float32) + 0.5

    loss = jax.block_until_ready(mmd_loss(source, target, kernel_type="rbf"))
    ref = jax.block_until_ready(_mmd_loss_ref(source, target))
    assert jnp.allclose(loss, ref, rtol=1e-3, atol=1e-5), (loss, ref)

    # Multi-tile, unequal-batch case: exercises triangular xx/yy tiling, the rectangular
    # xy grid, +inf-padded norms (row padding) and feature-dim padding to 128.
    s2 = jax.random.normal(k3, (160, 32), dtype=jnp.float32)
    t2 = jax.random.normal(k4, (144, 32), dtype=jnp.float32) * 1.3 + 0.25
    loss2 = jax.block_until_ready(mmd_loss(s2, t2, block_rows=128))
    ref2 = jax.block_until_ready(_mmd_loss_ref(s2, t2))
    assert jnp.allclose(loss2, ref2, rtol=1e-3, atol=1e-5), (loss2, ref2)

    # Non-power-of-two kernel_mul exercises the generic per-bandwidth exp fallback.
    loss3 = jax.block_until_ready(mmd_loss(source, target, kernel_mul=3.0))
    ref3 = jax.block_until_ready(_mmd_loss_ref(source, target, kernel_mul=3.0))
    assert jnp.allclose(loss3, ref3, rtol=1e-3, atol=1e-5), (loss3, ref3)

    # linear path
    lin = jax.block_until_ready(mmd_loss(source, target, kernel_type="linear"))
    lin_ref = jnp.sum((source.mean(0) - target.mean(0)) ** 2)
    assert jnp.allclose(lin, lin_ref, rtol=1e-4, atol=1e-5), (lin, lin_ref)

    # bf16 inputs feed the MXU natively (f32 accumulation); check against the f32
    # reference with a loose tolerance (bf16 Gram cancellation is O(||x||^2 * eps_bf16)).
    loss_bf16 = jax.block_until_ready(
        mmd_loss(source.astype(jnp.bfloat16), target.astype(jnp.bfloat16)))
    assert bool(jnp.isfinite(loss_bf16)), loss_bf16
    assert jnp.allclose(loss_bf16, ref, rtol=1e-1, atol=1e-2), (loss_bf16, ref)

    print("KERNEL_OK")
</pallas_src>

<mosaic_0001>
module attributes {stable_mosaic.version = 11 : i64} {
  func.func @_rbf_pair_sum_kernel(%arg0: i32, %arg1: memref<1xi32, #tpu.memory_space<smem>>, %arg2: memref<1xi32, #tpu.memory_space<smem>>, %arg3: memref<8x128xf32, #tpu.memory_space<vmem>>, %arg4: memref<8x128xf32, #tpu.memory_space<vmem>>, %arg5: memref<8x1xf32, #tpu.memory_space<vmem>>, %arg6: memref<1x8xf32, #tpu.memory_space<vmem>>, %arg7: memref<5xf32, #tpu.memory_space<smem>>, %arg8: memref<8x128xf32, #tpu.memory_space<vmem>>) attributes {dimension_semantics = [#tpu.dimension_semantics<parallel>], iteration_bounds = array<i64: 1>, scalar_prefetch = 2 : i64, scratch_operands = 0 : i64, tpu.core_type = #tpu.core_type<tc>, window_params = [{transform_indices = @transform_0, window_bounds = array<i64: 8, 128>}, {transform_indices = @transform_1, window_bounds = array<i64: 8, 128>}, {transform_indices = @transform_2, window_bounds = array<i64: 8, 1>}, {transform_indices = @transform_3, window_bounds = array<i64: 1, 8>}, {transform_indices = @transform_4, window_bounds = array<i64: 5>}, {transform_indices = @transform_5, window_bounds = array<i64: 8, 128>}]} {
    %c0 = arith.constant 0 : index
    %c0_0 = arith.constant 0 : index
    %0 = vector.load %arg3[%c0, %c0_0] : memref<8x128xf32, #tpu.memory_space<vmem>>, vector<8x128xf32>
    %c0_1 = arith.constant 0 : index
    %c0_2 = arith.constant 0 : index
    %1 = vector.load %arg4[%c0_1, %c0_2] : memref<8x128xf32, #tpu.memory_space<vmem>>, vector<8x128xf32>
    %cst = arith.constant dense<0.000000e+00> : vector<8x8xf32>
    %2 = tpu.matmul %0, %1, %cst {dimension_numbers = #tpu.dot_dimension_numbers<[1], [1], [0], [0], [0, 0, 1, 0], [], []>} : vector<8x128xf32>, vector<8x128xf32>, vector<8x8xf32> -> vector<8x8xf32>
    %c0_3 = arith.constant 0 : index
    %c0_4 = arith.constant 0 : index
    %3 = vector.load %arg5[%c0_3, %c0_4] : memref<8x1xf32, #tpu.memory_space<vmem>>, vector<8x1xf32>
    %c0_5 = arith.constant 0 : index
    %c0_6 = arith.constant 0 : index
    %4 = vector.load %arg6[%c0_5, %c0_6] : memref<1x8xf32, #tpu.memory_space<vmem>>, vector<1x8xf32>
    %5 = vector.broadcast %3 : vector<8x1xf32> to vector<8x8xf32>
    %6 = vector.broadcast %4 : vector<1x8xf32> to vector<8x8xf32>
    %7 = arith.addf %5, %6 : vector<8x8xf32>
    %cst_7 = arith.constant 2.000000e+00 : f32
    %8 = vector.broadcast %cst_7 : f32 to vector<8x8xf32>
    %9 = arith.mulf %8, %2 : vector<8x8xf32>
    %10 = arith.subf %7, %9 : vector<8x8xf32>
    %cst_8 = arith.constant 0.000000e+00 : f32
    %11 = vector.broadcast %cst_8 : f32 to vector<8x8xf32>
    %12 = arith.maximumf %10, %11 : vector<8x8xf32>
    %c4 = arith.constant 4 : index
    %13 = memref.load %arg7[%c4] : memref<5xf32, #tpu.memory_space<smem>>
    %14 = vector.broadcast %13 : f32 to vector<8x8xf32>
    %15 = arith.mulf %12, %14 : vector<8x8xf32>
    %16 = math.exp %15 : vector<8x8xf32>
    %17 = arith.mulf %16, %16 : vector<8x8xf32>
    %18 = arith.addf %16, %17 : vector<8x8xf32>
    %19 = arith.mulf %17, %17 : vector<8x8xf32>
    %20 = arith.addf %18, %19 : vector<8x8xf32>
    %21 = arith.mulf %19, %19 : vector<8x8xf32>
    %22 = arith.addf %20, %21 : vector<8x8xf32>
    %23 = arith.mulf %21, %21 : vector<8x8xf32>
    %24 = arith.addf %22, %23 : vector<8x8xf32>
    %25 = vector.shape_cast %24 : vector<8x8xf32> to vector<1x8x8xf32>
    %cst_9 = arith.constant dense<0.000000e+00> : vector<1xf32>
    %26 = vector.multi_reduction <add>, %25, %cst_9 [1, 2] : vector<1x8x8xf32> to vector<1xf32>
    %27 = vector.shape_cast %26 : vector<1xf32> to vector<1x1x1xf32>
    %28 = vector.extract %27[0, 0, 0] : f32 from vector<1x1x1xf32>
    %29 = arith.index_cast %arg0 : i32 to index
    %30 = memref.load %arg1[%29] : memref<1xi32, #tpu.memory_space<smem>>
    %31 = arith.index_cast %arg0 : i32 to index
    %32 = memref.load %arg2[%31] : memref<1xi32, #tpu.memory_space<smem>>
    %33 = arith.cmpi eq, %30, %32 : i32
    %cst_10 = arith.constant 1.000000e+00 : f32
    %cst_11 = arith.constant 2.000000e+00 : f32
    %34 = arith.select %33, %cst_10, %cst_11 : f32
    %35 = arith.mulf %28, %34 : f32
    %36 = tpu.iota {dimensions = array<i32: 0>} : vector<8x128xi32>
    %c0_i32 = arith.constant 0 : i32
    %37 = vector.broadcast %c0_i32 : i32 to vector<8x128xi32>
    %38 = arith.cmpi eq, %36, %37 : vector<8x128xi32>
    %39 = tpu.iota {dimensions = array<i32: 1>} : vector<8x128xi32>
    %c0_i32_12 = arith.constant 0 : i32
    %40 = vector.broadcast %c0_i32_12 : i32 to vector<8x128xi32>
    %41 = arith.cmpi eq, %39, %40 : vector<8x128xi32>
    %42 = arith.andi %38, %41 : vector<8x128xi1>
    %cst_13 = arith.constant 0.000000e+00 : f32
    %43 = vector.broadcast %35 : f32 to vector<8x128xf32>
    %44 = vector.broadcast %cst_13 : f32 to vector<8x128xf32>
    %45 = arith.select %42, %43, %44 : vector<8x128xi1>, vector<8x128xf32>
    %c0_14 = arith.constant 0 : index
    %c0_15 = arith.constant 0 : index
    %46 = vector.load %arg8[%c0_14, %c0_15] : memref<8x128xf32, #tpu.memory_space<vmem>>, vector<8x128xf32>
    tpu.vector_store %arg8[%c0_14, %c0_15], %45 {strides = array<i32>} : memref<8x128xf32, #tpu.memory_space<vmem>>, vector<8x128xf32>,
    return
  }
  func.func @transform_0(%arg0: i32, %arg1: memref<1xi32, #tpu.memory_space<smem>>, %arg2: memref<1xi32, #tpu.memory_space<smem>>) -> (i32, i32) {
    %0 = arith.index_cast %arg0 : i32 to index
    %1 = memref.load %arg1[%0] : memref<1xi32, #tpu.memory_space<smem>>
    %c0_i32 = arith.constant 0 : i32
    %c0_i32_0 = arith.constant 0 : i32
    return %1, %c0_i32 : i32, i32
  }
  func.func @transform_1(%arg0: i32, %arg1: memref<1xi32, #tpu.memory_space<smem>>, %arg2: memref<1xi32, #tpu.memory_space<smem>>) -> (i32, i32) {
    %0 = arith.index_cast %arg0 : i32 to index
    %1 = memref.load %arg2[%0] : memref<1xi32, #tpu.memory_space<smem>>
    %c0_i32 = arith.constant 0 : i32
    %c0_i32_0 = arith.constant 0 : i32
    return %1, %c0_i32 : i32, i32
  }
  func.func @transform_2(%arg0: i32, %arg1: memref<1xi32, #tpu.memory_space<smem>>, %arg2: memref<1xi32, #tpu.memory_space<smem>>) -> (i32, i32) {
    %0 = arith.index_cast %arg0 : i32 to index
    %1 = memref.load %arg1[%0] : memref<1xi32, #tpu.memory_space<smem>>
    %c0_i32 = arith.constant 0 : i32
    %c0_i32_0 = arith.constant 0 : i32
    return %1, %c0_i32 : i32, i32
  }
  func.func @transform_3(%arg0: i32, %arg1: memref<1xi32, #tpu.memory_space<smem>>, %arg2: memref<1xi32, #tpu.memory_space<smem>>) -> (i32, i32) {
    %0 = arith.index_cast %arg0 : i32 to index
    %1 = memref.load %arg2[%0] : memref<1xi32, #tpu.memory_space<smem>>
    %c0_i32 = arith.constant 0 : i32
    %c0_i32_0 = arith.constant 0 : i32
    return %c0_i32, %1 : i32, i32
  }
  func.func @transform_4(%arg0: i32, %arg1: memref<1xi32, #tpu.memory_space<smem>>, %arg2: memref<1xi32, #tpu.memory_space<smem>>) -> i32 {
    %c0_i32 = arith.constant 0 : i32
    %c0_i32_0 = arith.constant 0 : i32
    return %c0_i32 : i32
  }
  func.func @transform_5(%arg0: i32, %arg1: memref<1xi32, #tpu.memory_space<smem>>, %arg2: memref<1xi32, #tpu.memory_space<smem>>) -> (i32, i32) {
    %c0_i32 = arith.constant 0 : i32
    %c0_i32_0 = arith.constant 0 : i32
    return %arg0, %c0_i32 : i32, i32
  }
}

</mosaic_0001>

<llo_original>
// kernel: tpu_custom_call.1
$region0: #{tpu_custom_call.1}
  #allocation0 [shape = 'u32[]', space=smem, size = 0x4, offset = 0x4, fixed_abs, tag = 'smem constant byte address 0x4 - core index']
  #allocation1 [shape = 'u32[144,128]{1,0:T(1,128)}', space=vmem, size = 0x12000, scoped, tag = 'internal scratch']
  #allocation2 [shape = 's32[1]{0}', space=sflag, size = 0x4, scoped, tag = 'scoped memory for tpu_custom_call.1']
  #allocation3 [shape = 's32[1]{0:T(128)S(6)}', space=smem, size = 0x200, scoped, tag = 'prefetched SMEM operand 0']
  #allocation4 [shape = 's32[1]{0:T(128)S(6)}', space=smem, size = 0x200, scoped, tag = 'prefetched SMEM operand 1']
  %s0 = inlined_call_operand.<no memory space> [shape: s32[1], index: 0, kind: input, shape index: {}]
  %s1 = inlined_call_operand.<no memory space> [shape: s32[1], index: 1, kind: input, shape index: {}]
  %s2 = inlined_call_operand.vmem [shape: f32[8,128], index: 2, kind: input, shape index: {}]
  %s3 = inlined_call_operand.vmem [shape: f32[8,128], index: 3, kind: input, shape index: {}]
  %s4 = inlined_call_operand.vmem [shape: f32[8,1], index: 4, kind: input, shape index: {}]
  %s5 = inlined_call_operand.vmem [shape: f32[1,8], index: 5, kind: input, shape index: {}]
  %s6 = inlined_call_operand.vmem [shape: f32[5], index: 6, kind: input, shape index: {}]
  %s7 = inlined_call_operand.hbm [shape: f32[8,128], index: 7, kind: output, shape index: {}]
  %s8 = sld [smem:[#allocation0]]
  $region34: #{tpu_custom_call.1} parent=0
    _
  %s10 = ssub.s32 1, %s8
  %s11 = scalar_select 0, %s10, %s8
  %12 = sst [smem:[#allocation3]] %s0
  %13 = sst [smem:[#allocation4]] %s1
  $region1: #{tpu_custom_call.1} parent=0
    #allocation5 [shape = 'u8[512]{0}', space=smem, size = 0x200, scoped, tag = 'input window, operand 6, single buffered']
    #allocation6 [shape = 's32[1]{0}', space=sflag, size = 0x4, scoped, tag = 'scoped memory for tpu_custom_call.1']
    #allocation7 [shape = 's32[1]{0}', space=sflag, size = 0x4, scoped, tag = 'scoped memory for tpu_custom_call.1']
    #allocation8 [shape = 'u8[4096]{0}', space=vmem, size = 0x1000, scoped, tag = 'output window, operand 0, single buffered']
    %14 = vsyncpa [#allocation7], 0
    %15 = vsyncpa [#allocation6], 0
    // Predicated region
    $region2: #{tpu_custom_call.1} parent=1 // pred_check
      _
    $region3: #{tpu_custom_call.1} parent=1 // pred_check_branch
      %17 = sbr.rel (0) target = $region5
    $region4: #{tpu_custom_call.1} parent=1 // pred_region
      %s18 = sld [smem:[#allocation3]]
      %p19 = scmp.lt.s32.totalorder %s18, 0
      %s20 = scalar_select %p19, %s18, 0
      %s21 = smul.addr %s20, 8
      %s22 = scalar_lea.vmem %s2, %s21
      %s23 = sld [smem:[#allocation3]]
    $region5: #{tpu_custom_call.1} parent=1 // pred_fallthru
      _
    // Predicated region
    $region6: #{tpu_custom_call.1} parent=1 // pred_check
      _
    $region7: #{tpu_custom_call.1} parent=1 // pred_check_branch
      %25 = sbr.rel (0) target = $region9
    $region8: #{tpu_custom_call.1} parent=1 // pred_region
      %s26 = sld [smem:[#allocation4]]
      %p27 = scmp.lt.s32.totalorder %s26, 0
      %s28 = scalar_select %p27, %s26, 0
      %s29 = smul.addr %s28, 8
      %s30 = scalar_lea.vmem %s3, %s29
      %s31 = sld [smem:[#allocation4]]
    $region9: #{tpu_custom_call.1} parent=1 // pred_fallthru
      _
    // Predicated region
    $region10: #{tpu_custom_call.1} parent=1 // pred_check
      _
    $region11: #{tpu_custom_call.1} parent=1 // pred_check_branch
      %33 = sbr.rel (0) target = $region13
    $region12: #{tpu_custom_call.1} parent=1 // pred_region
      %s34 = sld [smem:[#allocation3]]
      %p35 = scmp.lt.s32.totalorder %s34, 0
      %s36 = scalar_select %p35, %s34, 0
      %s37 = smul.addr %s36, 8
      %s38 = scalar_lea.vmem %s4, %s37
      %s39 = sld [smem:[#allocation3]]
    $region13: #{tpu_custom_call.1} parent=1 // pred_fallthru
      _
    // Predicated region
    $region14: #{tpu_custom_call.1} parent=1 // pred_check
      _
    $region15: #{tpu_custom_call.1} parent=1 // pred_check_branch
      %41 = sbr.rel (0) target = $region17
    $region16: #{tpu_custom_call.1} parent=1 // pred_region
      %s42 = sld [smem:[#allocation4]]
      %p43 = scmp.lt.s32.totalorder %s42, 0
      %s44 = scalar_select %p43, %s42, 0
      %s45 = scalar_lea.vmem %s5, %s44
      %s46 = sld [smem:[#allocation4]]
    $region17: #{tpu_custom_call.1} parent=1 // pred_fallthru
      _
    // Predicated region
    $region18: #{tpu_custom_call.1} parent=1 // pred_check
      _
    $region19: #{tpu_custom_call.1} parent=1 // pred_check_branch
      %48 = sbr.rel (0) target = $region21
    $region20: #{tpu_custom_call.1} parent=1 // pred_region
      %s50 = ssub.s32 16, 16
      %51 = vsyncadd [#allocation7], %s50
      %s53 = sshll.u32 %s6, 4
      %s54 = int_to_ptr.vmem [resolvable:$true] %s53
      %56 = dma.vmem_to_smem %s54, 16, [#allocation5], [#allocation7]
    $region21: #{tpu_custom_call.1} parent=1 // pred_fallthru
      _
    // Predicated region
    $region22: #{tpu_custom_call.1} parent=1 // pred_check
      _
    $region23: #{tpu_custom_call.1} parent=1 // pred_check_branch
      %58 = sbr.rel (0) target = $region25
    $region24: #{tpu_custom_call.1} parent=1 // pred_region
      %59 = dma.done [#allocation7], 16
    $region25: #{tpu_custom_call.1} parent=1 // pred_fallthru
      _
    %60 = sfence
    %s61 = sld [smem:[#allocation3]]
    %p62 = scmp.lt.s32.totalorder %s61, 0
    %s63 = scalar_select %p62, %s61, 0
    %s64 = smul.addr %s63, 8
    %s65 = scalar_lea.vmem %s2, %s64
    %s66 = sld [smem:[#allocation4]]
    %p67 = scmp.lt.s32.totalorder %s66, 0
    %s68 = scalar_select %p67, %s66, 0
    %s69 = smul.addr %s68, 8
    %s70 = scalar_lea.vmem %s3, %s69
    %s71 = sld [smem:[#allocation3]]
    %p72 = scmp.lt.s32.totalorder %s71, 0
    %s73 = scalar_select %p72, %s71, 0
    %s74 = smul.addr %s73, 8
    %s75 = scalar_lea.vmem %s4, %s74
    %s76 = sld [smem:[#allocation4]]
    %p77 = scmp.lt.s32.totalorder %s76, 0
    %s78 = scalar_select %p77, %s76, 0
    %s79 = scalar_lea.vmem %s5, %s78
    %s80 = sld [smem:[#allocation3]]
    %p81 = scmp.lt.s32.totalorder %s80, 0
    %s82 = scalar_select %p81, %s80, 0
    %s83 = smul.addr %s82, 8
    %s84 = scalar_lea.vmem %s2, %s83
    %s85 = sld [smem:[#allocation3]]
    %s86 = sld [smem:[#allocation4]]
    %p87 = scmp.lt.s32.totalorder %s86, 0
    %s88 = scalar_select %p87, %s86, 0
    %s89 = smul.addr %s88, 8
    %s90 = scalar_lea.vmem %s3, %s89
    %s91 = sld [smem:[#allocation4]]
    %s92 = sld [smem:[#allocation3]]
    %p93 = scmp.lt.s32.totalorder %s92, 0
    %s94 = scalar_select %p93, %s92, 0
    %s95 = smul.addr %s94, 8
    %s96 = scalar_lea.vmem %s4, %s95
    %s97 = sld [smem:[#allocation3]]
    %s98 = sld [smem:[#allocation4]]
    %p99 = scmp.lt.s32.totalorder %s98, 0
    %s100 = scalar_select %p99, %s98, 0
    %s101 = scalar_lea.vmem %s5, %s100
    %s102 = sld [smem:[#allocation4]]
    %v103 = vld [vmem:[%s84] sm:$0xff]
    %v104 = vld [vmem:[%s90] sm:$0xff]
    %105 = vmatprep.subr.mxu0 0.0
    %106 = vmatpush1.xpose.msra.mxu0 %v104
    %107 = vmatprep.subr.mxu0 0.0
    %108 = vmatpush1.xpose.msra.mxu0 0.0
    %109 = vmatprep.subr.mxu0 0.0
    %110 = vmatpush1.xpose.msra.mxu0 0.0
    %111 = vmatprep.subr.mxu0 0.0
    %112 = vmatpush1.xpose.msra.mxu0 0.0
    %113 = vmatprep.subr.mxu0 0.0
    %114 = vmatpush1.xpose.msra.mxu0 0.0
    %115 = vmatprep.subr.mxu0 0.0
    %116 = vmatpush1.xpose.msra.mxu0 0.0
    %117 = vmatprep.subr.mxu0 0.0
    %118 = vmatpush1.xpose.msra.mxu0 0.0
    %119 = vmatprep.subr.mxu0 0.0
    %120 = vmatpush1.xpose.msra.mxu0 0.0
    %121 = vmatprep.subr.mxu0 0.0
    %122 = vmatpush1.xpose.msra.mxu0 0.0
    %123 = vmatprep.subr.mxu0 0.0
    %124 = vmatpush1.xpose.msra.mxu0 0.0
    %125 = vmatprep.subr.mxu0 0.0
    %126 = vmatpush1.xpose.msra.mxu0 0.0
    %127 = vmatprep.subr.mxu0 0.0
    %128 = vmatpush1.xpose.msra.mxu0 0.0
    %129 = vmatprep.subr.mxu0 0.0
    %130 = vmatpush1.xpose.msra.mxu0 0.0
    %131 = vmatprep.subr.mxu0 0.0
    %132 = vmatpush1.xpose.msra.mxu0 0.0
    %133 = vmatprep.subr.mxu0 0.0
    %134 = vmatpush1.xpose.msra.mxu0 0.0
    %135 = vmatprep.subr.mxu0 0.0
    %136 = vmatpush1.xpose.msra.mxu0 0.0
    %137 = vmatprep.subr.mxu0 0.0
    %138 = vmatpush1.xpose.msra.mxu0 0.0
    %139 = vmatprep.subr.mxu0 0.0
    %140 = vmatpush1.xpose.msra.mxu0 0.0
    %141 = vmatprep.subr.mxu0 0.0
    %142 = vmatpush1.xpose.msra.mxu0 0.0
    %143 = vmatprep.subr.mxu0 0.0
    %144 = vmatpush1.xpose.msra.mxu0 0.0
    %145 = vmatprep.subr.mxu0 0.0
    %146 = vmatpush1.xpose.msra.mxu0 0.0
    %147 = vmatprep.subr.mxu0 0.0
    %148 = vmatpush1.xpose.msra.mxu0 0.0
    %149 = vmatprep.subr.mxu0 0.0
    %150 = vmatpush1.xpose.msra.mxu0 0.0
    %151 = vmatprep.subr.mxu0 0.0
    %152 = vmatpush1.xpose.msra.mxu0 0.0
    %153 = vmatprep.subr.mxu0 0.0
    %154 = vmatpush1.xpose.msra.mxu0 0.0
    %155 = vmatprep.subr.mxu0 0.0
    %156 = vmatpush1.xpose.msra.mxu0 0.0
    %157 = vmatprep.subr.mxu0 0.0
    %158 = vmatpush1.xpose.msra.mxu0 0.0
    %159 = vmatprep.subr.mxu0 0.0
    %160 = vmatpush1.xpose.msra.mxu0 0.0
    %161 = vmatprep.subr.mxu0 0.0
    %162 = vmatpush1.xpose.msra.mxu0 0.0
    %163 = vmatprep.subr.mxu0 0.0
    %164 = vmatpush1.xpose.msra.mxu0 0.0
    %165 = vmatprep.subr.mxu0 0.0
    %166 = vmatpush1.xpose.msra.mxu0 0.0
    %167 = vmatprep.subr.mxu0 0.0
    %168 = vmatpush1.xpose.msra.mxu0 0.0
    %169 = vmatprep.mubr.f32.mxu0 0.0
    %170 = vmatmul.mubr.f32.gmra.mrb[0].mxu0 %v103
    %v171 = vpop.f32.mrb[0].mxu0
    %v172 = vadd.f32 0.0, %v171
    %v173 = vpop.f32.mrb[0].mxu0
    %174 = vdwg.mxu0
    %v175 = vld [vmem:[%s96] sm:$0xff]
    %v176 = vld [vmem:[%s101] sm:$0x1]
    %178 = vset.pattern.permute.xlu0 0
    %179 = vperm.xlu0 %178, %v175
    %v180 = vpop.permute.xlu0 %179
    %v183 = vlaneseq
    %v184 = vshrl.u32 %v183, 7
    %v185 = vsub.s32 0, %v184
    %v186 = vrot.slane %v176, %v185
    %v188 = vadd.f32 %v180, %v186
    %v189 = vmul.f32 %v172, 2.0
    %v190 = vsub.f32 %v188, %v189
    %v191 = vmax.f32 %v190, 0.0
    %s192 = sld [smem:[#allocation5 + $0x4]]
    %v193 = vstv %s192
    %v194 = vmul.f32 %v191, %v193
    %v195 = vmul.f32 %v194, 1.442695
    %v196 = vpow.pop %v195
    %v197 = vmul.f32 %v196, %v196
    %v198 = vadd.f32 %v196, %v197
    %v199 = vmul.f32 %v197, %v197
    %v200 = vadd.f32 %v198, %v199
    %v201 = vmul.f32 %v199, %v199
    %v202 = vadd.f32 %v200, %v201
    %v203 = vmul.f32 %v201, %v201
    %v204 = vadd.f32 %v202, %v203
    %vm205 = vcmask 64512
    %v206 = vsel %vm205, %v204, 0.0
    %207 = vadd.xlane.f32.xlu0 %v206
    %v208 = vpop.xlane.xlu0 %207
    %v209 = vrot.slane %v208, 4
    %v210 = vadd.f32 %v208, %v209
    %v211 = vrot.slane %v210, 2
    %v212 = vadd.f32 %v210, %v211
    %v213 = vrot.slane %v212, 1
    %v214 = vadd.f32 %v212, %v213
    %s215 = vtos %v214
    %s216 = sld [smem:[#allocation3]]
    %s217 = sld [smem:[#allocation4]]
    %p218 = scmp.eq.s32.totalorder %s216, %s217
    %s219 = scalar_select %p218, 1.0, 2.0
    %s220 = smul.f32 %s215, %s219
    %v221 = vlaneseq
    %v222 = vshrl.u32 %v221, 7
    %vm223 = vcmp.eq.s32.totalorder %v222, 0
    %v224 = vlaneseq
    %v225 = vand.u32 %v224, 127
    %vm226 = vcmp.eq.s32.totalorder %v225, 0
    %vm227 = vmand %vm223, %vm226
    %v228 = vstv %s220
    %v229 = vsel %vm227, %v228, 0.0
    %230 = vst [vmem:[#allocation8] sm:$0xff] %v229
    // Predicated region
    $region26: #{tpu_custom_call.1} parent=1 // pred_check
      _
    $region27: #{tpu_custom_call.1} parent=1 // pred_check_branch
      %232 = sbr.rel (0) target = $region29
    $region28: #{tpu_custom_call.1} parent=1 // pred_region
      %s234 = ssub.s32 128, 128
      %235 = vsyncadd [#allocation6], %s234
      %s237 = sshll.u32 [#allocation8], 4
      %s238 = int_to_ptr.vmem [resolvable:$true] %s237
      %240 = dma.vmem_to_hbm [thread:$0]  %s238, 128, %s7, [#allocation6]
    $region29: #{tpu_custom_call.1} parent=1 // pred_fallthru
      _
    // Predicated region
    $region30: #{tpu_custom_call.1} parent=1 // pred_check
      _
    $region31: #{tpu_custom_call.1} parent=1 // pred_check_branch
      %242 = sbr.rel (0) target = $region33
    $region32: #{tpu_custom_call.1} parent=1 // pred_region
      %243 = dma.done [#allocation6], 128
    $region33: #{tpu_custom_call.1} parent=1 // pred_fallthru
      _
    %244 = vsyncpa [#allocation6], 1
    %245 = vsyncpa [#allocation7], 1

</llo_original>
